<compile_context>
chip_gen: v6e
topology: v6e:2x2x1
jax: 0.10.0
libtpu: 0.0.40
codegen_flags: <defaults>
</compile_context>

<pallas_src>
import jax
import jax.numpy as jnp
from jax.experimental import pallas as pl
from jax.experimental.pallas import tpu as pltpu

_HIDDEN = 512
_NUM_CLASSES = 10
_PADDED_OUT = 128  # lane-dense logits tile; real classes live in [:, :10]


def _round_up(n, m):
    return ((n + m - 1) // m) * m


def _mlp_kernel(x_ref, w1_ref, b1_ref, w2_ref, b2_ref, w3_ref, b3_ref, o_ref):
    # fc1 + relu
    h1 = jnp.dot(x_ref[...], w1_ref[...], preferred_element_type=jnp.float32)
    h1 = jnp.maximum(h1 + b1_ref[...], 0.0)
    # fc21 + relu
    h2 = jnp.dot(h1, w2_ref[...], preferred_element_type=jnp.float32)
    h2 = jnp.maximum(h2 + b2_ref[...], 0.0)
    # fc3 (logits, padded to 128 lanes; padded columns are exactly zero-weight)
    o_ref[...] = (
        jnp.dot(h2, w3_ref[...], preferred_element_type=jnp.float32) + b3_ref[...]
    )


def prepare_params(params):
    """One-time prep: transpose weights to (in, out), pad fc3 to 128 output
    lanes, reshape biases to (1, out). Keep this OUT of the per-call hot path."""
    w1, b1, w2, b2, w3, b3 = params
    w1t = jnp.asarray(w1.T, jnp.float32)                 # (input_size, 512)
    w2t = jnp.asarray(w2.T, jnp.float32)                 # (512, 512)
    w3t = jnp.zeros((w3.shape[1], _PADDED_OUT), jnp.float32)
    w3t = w3t.at[:, : w3.shape[0]].set(w3.T)             # (512, 128), zero-padded
    b3p = jnp.zeros((1, _PADDED_OUT), jnp.float32)
    b3p = b3p.at[:, : b3.shape[0]].set(b3)               # (1, 128)
    return (w1t, b1[None, :].astype(jnp.float32), w2t,
            b2[None, :].astype(jnp.float32), w3t, b3p)


def net_forward(x_nchw, prepped_params, *, block_b=256):
    """Run the Net forward pass. x_nchw: (B, ...) float32 (flattened like
    torch's x.view(B, -1)). prepped_params: output of prepare_params()."""
    B = x_nchw.shape[0]
    x2d = x_nchw.reshape(B, -1)
    input_size = x2d.shape[1]
    w1t, b1r, w2t, b2r, w3t, b3r = prepped_params
    assert w1t.shape[0] == input_size, "input_size mismatch with fc1"

    # Batch tile: multiple of 8 (sublane), capped at block_b; pad B up to it.
    bm = min(block_b, _round_up(B, 8))
    b_pad = _round_up(B, bm)
    if b_pad != B:
        x2d = jnp.pad(x2d, ((0, b_pad - B), (0, 0)))
    grid = (b_pad // bm,)

    def resident(arr):
        # Same block index every grid step -> stays VMEM-resident (no re-DMA).
        return pl.BlockSpec(arr.shape, lambda i: (0, 0))

    cost = pl.CostEstimate(
        flops=2 * b_pad * (input_size * _HIDDEN
                           + _HIDDEN * _HIDDEN
                           + _HIDDEN * _PADDED_OUT),
        transcendentals=0,
        bytes_accessed=4 * (x2d.size + w1t.size + w2t.size + w3t.size
                            + b1r.size + b2r.size + b3r.size
                            + b_pad * _PADDED_OUT),
    )

    out_padded = pl.pallas_call(
        _mlp_kernel,
        out_shape=jax.ShapeDtypeStruct((b_pad, _PADDED_OUT), jnp.float32),
        grid=grid,
        in_specs=[
            pl.BlockSpec((bm, input_size), lambda i: (i, 0)),  # x: tiled over batch
            resident(w1t), resident(b1r),
            resident(w2t), resident(b2r),
            resident(w3t), resident(b3r),
        ],
        out_specs=pl.BlockSpec((bm, _PADDED_OUT), lambda i: (i, 0)),
        compiler_params=pltpu.CompilerParams(
            dimension_semantics=("parallel",),  # batch grid shards across TCs (v7x)
        ),
        cost_estimate=cost,
    )(x2d, w1t, b1r, w2t, b2r, w3t, b3r)

    # Strip batch padding and the lane-padding of the logits.
    return out_padded[:B, :_NUM_CLASSES]


def init_params(key, input_size, hidden=_HIDDEN, num_classes=_NUM_CLASSES):
    """Deterministic synthetic parameters matching nn.Linear shapes (out, in)."""
    ks = jax.random.split(key, 6)

    def lin(kw, kb, fan_in, fan_out):
        bound = 1.0 / jnp.sqrt(fan_in)
        w = jax.random.uniform(kw, (fan_out, fan_in), jnp.float32, -bound, bound)
        b = jax.random.uniform(kb, (fan_out,), jnp.float32, -bound, bound)
        return w, b

    w1, b1 = lin(ks[0], ks[1], input_size, hidden)   # fc1
    w2, b2 = lin(ks[2], ks[3], hidden, hidden)       # fc21
    w3, b3 = lin(ks[4], ks[5], hidden, num_classes)  # fc3
    return (w1, b1, w2, b2, w3, b3)


def reference_forward(x_nchw, params):
    """Pure-JAX reference (mirrors the PyTorch forward exactly)."""
    w1, b1, w2, b2, w3, b3 = params
    x = x_nchw.reshape(x_nchw.shape[0], -1)
    x = jnp.maximum(x @ w1.T + b1, 0.0)
    x = jnp.maximum(x @ w2.T + b2, 0.0)
    return x @ w3.T + b3


if __name__ == "__main__":
    key = jax.random.PRNGKey(0)
    k_x, k_p = jax.random.split(key)

    # Small NCHW input: batch=8, channels=4, spatial=8x8 -> input_size=256.
    B, C, H, W = 8, 4, 8, 8
    input_size = C * H * W
    x = jax.random.normal(k_x, (B, C, H, W), dtype=jnp.float32)

    params = init_params(k_p, input_size)
    prepped = prepare_params(params)   # one-time weight transpose / padding

    logits = net_forward(x, prepped)
    logits = jax.block_until_ready(logits)

    ref = reference_forward(x, params)
    assert logits.shape == (B, _NUM_CLASSES), logits.shape
    assert jnp.allclose(logits, ref, atol=1e-4, rtol=1e-4), "mismatch vs reference"

    print("KERNEL_OK")
</pallas_src>

<mosaic_0001>
module attributes {stable_mosaic.version = 11 : i64} {
  func.func @_mlp_kernel(%arg0: i32, %arg1: memref<8x256xf32, #tpu.memory_space<vmem>>, %arg2: memref<256x512xf32, #tpu.memory_space<vmem>>, %arg3: memref<1x512xf32, #tpu.memory_space<vmem>>, %arg4: memref<512x512xf32, #tpu.memory_space<vmem>>, %arg5: memref<1x512xf32, #tpu.memory_space<vmem>>, %arg6: memref<512x128xf32, #tpu.memory_space<vmem>>, %arg7: memref<1x128xf32, #tpu.memory_space<vmem>>, %arg8: memref<8x128xf32, #tpu.memory_space<vmem>>) attributes {dimension_semantics = [#tpu.dimension_semantics<parallel>], iteration_bounds = array<i64: 1>, scalar_prefetch = 0 : i64, scratch_operands = 0 : i64, tpu.core_type = #tpu.core_type<tc>, window_params = [{transform_indices = @transform_0, window_bounds = array<i64: 8, 256>}, {pipeline_mode = #tpu.pipeline_mode<synchronous>, transform_indices = @transform_1, window_bounds = array<i64: 256, 512>}, {pipeline_mode = #tpu.pipeline_mode<synchronous>, transform_indices = @transform_2, window_bounds = array<i64: 1, 512>}, {pipeline_mode = #tpu.pipeline_mode<synchronous>, transform_indices = @transform_3, window_bounds = array<i64: 512, 512>}, {pipeline_mode = #tpu.pipeline_mode<synchronous>, transform_indices = @transform_4, window_bounds = array<i64: 1, 512>}, {pipeline_mode = #tpu.pipeline_mode<synchronous>, transform_indices = @transform_5, window_bounds = array<i64: 512, 128>}, {pipeline_mode = #tpu.pipeline_mode<synchronous>, transform_indices = @transform_6, window_bounds = array<i64: 1, 128>}, {transform_indices = @transform_7, window_bounds = array<i64: 8, 128>}]} {
    %c0 = arith.constant 0 : index
    %c0_0 = arith.constant 0 : index
    %0 = vector.load %arg1[%c0, %c0_0] : memref<8x256xf32, #tpu.memory_space<vmem>>, vector<8x256xf32>
    %c0_1 = arith.constant 0 : index
    %c0_2 = arith.constant 0 : index
    %1 = vector.load %arg2[%c0_1, %c0_2] : memref<256x512xf32, #tpu.memory_space<vmem>>, vector<256x512xf32>
    %cst = arith.constant dense<0.000000e+00> : vector<8x512xf32>
    %2 = tpu.matmul %0, %1, %cst {dimension_numbers = #tpu.dot_dimension_numbers<[1], [0], [0], [1], [0, 0, 1, 1], [], []>} : vector<8x256xf32>, vector<256x512xf32>, vector<8x512xf32> -> vector<8x512xf32>
    %c0_3 = arith.constant 0 : index
    %c0_4 = arith.constant 0 : index
    %3 = vector.load %arg3[%c0_3, %c0_4] : memref<1x512xf32, #tpu.memory_space<vmem>>, vector<1x512xf32>
    %4 = vector.broadcast %3 : vector<1x512xf32> to vector<8x512xf32>
    %5 = arith.addf %2, %4 : vector<8x512xf32>
    %cst_5 = arith.constant 0.000000e+00 : f32
    %6 = vector.broadcast %cst_5 : f32 to vector<8x512xf32>
    %7 = arith.maximumf %5, %6 : vector<8x512xf32>
    %c0_6 = arith.constant 0 : index
    %c0_7 = arith.constant 0 : index
    %8 = vector.load %arg4[%c0_6, %c0_7] : memref<512x512xf32, #tpu.memory_space<vmem>>, vector<512x512xf32>
    %cst_8 = arith.constant dense<0.000000e+00> : vector<8x512xf32>
    %9 = tpu.matmul %7, %8, %cst_8 {dimension_numbers = #tpu.dot_dimension_numbers<[1], [0], [0], [1], [0, 0, 1, 1], [], []>} : vector<8x512xf32>, vector<512x512xf32>, vector<8x512xf32> -> vector<8x512xf32>
    %c0_9 = arith.constant 0 : index
    %c0_10 = arith.constant 0 : index
    %10 = vector.load %arg5[%c0_9, %c0_10] : memref<1x512xf32, #tpu.memory_space<vmem>>, vector<1x512xf32>
    %11 = vector.broadcast %10 : vector<1x512xf32> to vector<8x512xf32>
    %12 = arith.addf %9, %11 : vector<8x512xf32>
    %cst_11 = arith.constant 0.000000e+00 : f32
    %13 = vector.broadcast %cst_11 : f32 to vector<8x512xf32>
    %14 = arith.maximumf %12, %13 : vector<8x512xf32>
    %c0_12 = arith.constant 0 : index
    %c0_13 = arith.constant 0 : index
    %15 = vector.load %arg6[%c0_12, %c0_13] : memref<512x128xf32, #tpu.memory_space<vmem>>, vector<512x128xf32>
    %cst_14 = arith.constant dense<0.000000e+00> : vector<8x128xf32>
    %16 = tpu.matmul %14, %15, %cst_14 {dimension_numbers = #tpu.dot_dimension_numbers<[1], [0], [0], [1], [0, 0, 1, 1], [], []>} : vector<8x512xf32>, vector<512x128xf32>, vector<8x128xf32> -> vector<8x128xf32>
    %c0_15 = arith.constant 0 : index
    %c0_16 = arith.constant 0 : index
    %17 = vector.load %arg7[%c0_15, %c0_16] : memref<1x128xf32, #tpu.memory_space<vmem>>, vector<1x128xf32>
    %18 = vector.broadcast %17 : vector<1x128xf32> to vector<8x128xf32>
    %19 = arith.addf %16, %18 : vector<8x128xf32>
    %c0_17 = arith.constant 0 : index
    %c0_18 = arith.constant 0 : index
    %20 = vector.load %arg8[%c0_17, %c0_18] : memref<8x128xf32, #tpu.memory_space<vmem>>, vector<8x128xf32>
    tpu.vector_store %arg8[%c0_17, %c0_18], %19 {strides = array<i32>} : memref<8x128xf32, #tpu.memory_space<vmem>>, vector<8x128xf32>,
    return
  }
  func.func @transform_0(%arg0: i32) -> (i32, i32) {
    %c0_i32 = arith.constant 0 : i32
    %c0_i32_0 = arith.constant 0 : i32
    return %arg0, %c0_i32 : i32, i32
  }
  func.func @transform_1(%arg0: i32) -> (i32, i32) {
    %c0_i32 = arith.constant 0 : i32
    %c0_i32_0 = arith.constant 0 : i32
    %c0_i32_1 = arith.constant 0 : i32
    return %c0_i32, %c0_i32_0 : i32, i32
  }
  func.func @transform_2(%arg0: i32) -> (i32, i32) {
    %c0_i32 = arith.constant 0 : i32
    %c0_i32_0 = arith.constant 0 : i32
    %c0_i32_1 = arith.constant 0 : i32
    return %c0_i32, %c0_i32_0 : i32, i32
  }
  func.func @transform_3(%arg0: i32) -> (i32, i32) {
    %c0_i32 = arith.constant 0 : i32
    %c0_i32_0 = arith.constant 0 : i32
    %c0_i32_1 = arith.constant 0 : i32
    return %c0_i32, %c0_i32_0 : i32, i32
  }
  func.func @transform_4(%arg0: i32) -> (i32, i32) {
    %c0_i32 = arith.constant 0 : i32
    %c0_i32_0 = arith.constant 0 : i32
    %c0_i32_1 = arith.constant 0 : i32
    return %c0_i32, %c0_i32_0 : i32, i32
  }
  func.func @transform_5(%arg0: i32) -> (i32, i32) {
    %c0_i32 = arith.constant 0 : i32
    %c0_i32_0 = arith.constant 0 : i32
    %c0_i32_1 = arith.constant 0 : i32
    return %c0_i32, %c0_i32_0 : i32, i32
  }
  func.func @transform_6(%arg0: i32) -> (i32, i32) {
    %c0_i32 = arith.constant 0 : i32
    %c0_i32_0 = arith.constant 0 : i32
    %c0_i32_1 = arith.constant 0 : i32
    return %c0_i32, %c0_i32_0 : i32, i32
  }
  func.func @transform_7(%arg0: i32) -> (i32, i32) {
    %c0_i32 = arith.constant 0 : i32
    %c0_i32_0 = arith.constant 0 : i32
    return %arg0, %c0_i32 : i32, i32
  }
}

</mosaic_0001>

<llo_original>
// kernel: tpu_custom_call.1
$region0: #{tpu_custom_call.1}
  #allocation0 [shape = 'u32[]', space=smem, size = 0x4, offset = 0x4, fixed_abs, tag = 'smem constant byte address 0x4 - core index']
  #allocation1 [shape = 'u32[144,128]{1,0:T(1,128)}', space=vmem, size = 0x12000, scoped, tag = 'internal scratch']
  %s0 = inlined_call_operand.hbm [shape: f32[8,256], index: 0, kind: input, shape index: {}]
  %s1 = inlined_call_operand.hbm [shape: f32[256,512], index: 1, kind: input, shape index: {}]
  %s2 = inlined_call_operand.hbm [shape: f32[1,512], index: 2, kind: input, shape index: {}]
  %s3 = inlined_call_operand.hbm [shape: f32[512,512], index: 3, kind: input, shape index: {}]
  %s4 = inlined_call_operand.vmem [shape: f32[1,512], index: 4, kind: input, shape index: {}]
  %s5 = inlined_call_operand.hbm [shape: f32[512,128], index: 5, kind: input, shape index: {}]
  %s6 = inlined_call_operand.vmem [shape: f32[1,128], index: 6, kind: input, shape index: {}]
  %s7 = inlined_call_operand.hbm [shape: f32[8,128], index: 7, kind: output, shape index: {}]
  %s8 = sld [smem:[#allocation0]]
  $region58: #{tpu_custom_call.1} parent=0
    _
  %s10 = ssub.s32 1, %s8
  %s11 = scalar_select 0, %s10, %s8
  $region1: #{tpu_custom_call.1} parent=0
    #allocation2 [shape = 'u8[8192]{0}', space=vmem, size = 0x2000, scoped, tag = 'input window, operand 0, single buffered']
    #allocation3 [shape = 's32[1]{0}', space=sflag, size = 0x4, scoped, tag = 'scoped memory for tpu_custom_call.1']
    #allocation4 [shape = 's32[1]{0}', space=sflag, size = 0x4, scoped, tag = 'scoped memory for tpu_custom_call.1']
    #allocation5 [shape = 'u8[524288]{0}', space=vmem, size = 0x80000, scoped, tag = 'input window, operand 1, single buffered']
    #allocation6 [shape = 's32[1]{0}', space=sflag, size = 0x4, scoped, tag = 'scoped memory for tpu_custom_call.1']
    #allocation7 [shape = 'u8[2048]{0}', space=vmem, size = 0x800, scoped, tag = 'input window, operand 2, single buffered']
    #allocation8 [shape = 'u8[1048576]{0}', space=vmem, size = 0x100000, scoped, tag = 'input window, operand 3, single buffered']
    #allocation9 [shape = 's32[1]{0}', space=sflag, size = 0x4, scoped, tag = 'scoped memory for tpu_custom_call.1']
    #allocation10 [shape = 'u8[262144]{0}', space=vmem, size = 0x40000, scoped, tag = 'input window, operand 5, single buffered']
    #allocation11 [shape = 'u8[4096]{0}', space=vmem, size = 0x1000, scoped, tag = 'output window, operand 0, single buffered']
    %12 = vsyncpa [#allocation3], 0
    %13 = vsyncpa [#allocation6], 0
    %14 = vsyncpa [#allocation9], 0
    %15 = vsyncpa [#allocation4], 0
    // Predicated region
    $region2: #{tpu_custom_call.1} parent=1 // pred_check
      _
    $region3: #{tpu_custom_call.1} parent=1 // pred_check_branch
      %17 = sbr.rel (0) target = $region5
    $region4: #{tpu_custom_call.1} parent=1 // pred_region
      %s19 = ssub.s32 256, 256
      %20 = vsyncadd [#allocation3], %s19
      %s22 = sshll.u32 [#allocation2], 4
      %s23 = int_to_ptr.vmem [resolvable:$true] %s22
      %25 = dma.hbm_to_vmem [thread:$0]  %s0, 256, %s23, [#allocation3]
    $region5: #{tpu_custom_call.1} parent=1 // pred_fallthru
      _
    // Predicated region
    $region6: #{tpu_custom_call.1} parent=1 // pred_check
      _
    $region7: #{tpu_custom_call.1} parent=1 // pred_check_branch
      %27 = sbr.rel (0) target = $region9
    $region8: #{tpu_custom_call.1} parent=1 // pred_region
      %s29 = ssub.s32 16384, 16384
      %30 = vsyncadd [#allocation6], %s29
      %s31 = sshll.u32 [#allocation5], 4
      %s32 = int_to_ptr.vmem [resolvable:$true] %s31
      %37 = dma.hbm_to_vmem [thread:$0]  %s1, 16384, %s32, [#allocation6], 512, 512, 32
    $region9: #{tpu_custom_call.1} parent=1 // pred_fallthru
      _
    // Predicated region
    $region10: #{tpu_custom_call.1} parent=1 // pred_check
      _
    $region11: #{tpu_custom_call.1} parent=1 // pred_check_branch
      %39 = sbr.rel (0) target = $region13
    $region12: #{tpu_custom_call.1} parent=1 // pred_region
      %s41 = ssub.s32 64, 64
      %42 = vsyncadd [#allocation6], %s41
      %s44 = sshll.u32 [#allocation7], 4
      %s45 = int_to_ptr.vmem [resolvable:$true] %s44
      %47 = dma.hbm_to_vmem [thread:$0]  %s2, 64, %s45, [#allocation6]
    $region13: #{tpu_custom_call.1} parent=1 // pred_fallthru
      _
    // Predicated region
    $region14: #{tpu_custom_call.1} parent=1 // pred_check
      _
    $region15: #{tpu_custom_call.1} parent=1 // pred_check_branch
      %49 = sbr.rel (0) target = $region17
    $region16: #{tpu_custom_call.1} parent=1 // pred_region
      %s51 = ssub.s32 32768, 32768
      %52 = vsyncadd [#allocation9], %s51
      %s53 = sshll.u32 [#allocation8], 4
      %s54 = int_to_ptr.vmem [resolvable:$true] %s53
      %59 = dma.hbm_to_vmem [thread:$0]  %s3, 32768, %s54, [#allocation9], 512, 512, 32
    $region17: #{tpu_custom_call.1} parent=1 // pred_fallthru
      _
    // Predicated region
    $region18: #{tpu_custom_call.1} parent=1 // pred_check
      _
    $region19: #{tpu_custom_call.1} parent=1 // pred_check_branch
      %61 = sbr.rel (0) target = $region21
    $region20: #{tpu_custom_call.1} parent=1 // pred_region
      _
    $region21: #{tpu_custom_call.1} parent=1 // pred_fallthru
      _
    // Predicated region
    $region22: #{tpu_custom_call.1} parent=1 // pred_check
      _
    $region23: #{tpu_custom_call.1} parent=1 // pred_check_branch
      %63 = sbr.rel (0) target = $region25
    $region24: #{tpu_custom_call.1} parent=1 // pred_region
      %s65 = ssub.s32 8192, 8192
      %66 = vsyncadd [#allocation9], %s65
      %s67 = sshll.u32 [#allocation10], 4
      %s68 = int_to_ptr.vmem [resolvable:$true] %s67
      %73 = dma.hbm_to_vmem [thread:$0]  %s5, 8192, %s68, [#allocation9], 128, 128, 8
    $region25: #{tpu_custom_call.1} parent=1 // pred_fallthru
      _
    // Predicated region
    $region26: #{tpu_custom_call.1} parent=1 // pred_check
      _
    $region27: #{tpu_custom_call.1} parent=1 // pred_check_branch
      %75 = sbr.rel (0) target = $region29
    $region28: #{tpu_custom_call.1} parent=1 // pred_region
      _
    $region29: #{tpu_custom_call.1} parent=1 // pred_fallthru
      _
    // Predicated region
    $region30: #{tpu_custom_call.1} parent=1 // pred_check
      _
    $region31: #{tpu_custom_call.1} parent=1 // pred_check_branch
      %77 = sbr.rel (0) target = $region33
    $region32: #{tpu_custom_call.1} parent=1 // pred_region
      %78 = dma.done [#allocation3], 256
    $region33: #{tpu_custom_call.1} parent=1 // pred_fallthru
      _
    // Predicated region
    $region34: #{tpu_custom_call.1} parent=1 // pred_check
      _
    $region35: #{tpu_custom_call.1} parent=1 // pred_check_branch
      %80 = sbr.rel (0) target = $region37
    $region36: #{tpu_custom_call.1} parent=1 // pred_region
      %81 = dma.done [#allocation6], 16384
    $region37: #{tpu_custom_call.1} parent=1 // pred_fallthru
      _
    // Predicated region
    $region38: #{tpu_custom_call.1} parent=1 // pred_check
      _
    $region39: #{tpu_custom_call.1} parent=1 // pred_check_branch
      %83 = sbr.rel (0) target = $region41
    $region40: #{tpu_custom_call.1} parent=1 // pred_region
      %84 = dma.done [#allocation6], 64
    $region41: #{tpu_custom_call.1} parent=1 // pred_fallthru
      _
    // Predicated region
    $region42: #{tpu_custom_call.1} parent=1 // pred_check
      _
    $region43: #{tpu_custom_call.1} parent=1 // pred_check_branch
      %86 = sbr.rel (0) target = $region45
    $region44: #{tpu_custom_call.1} parent=1 // pred_region
      %87 = dma.done [#allocation9], 32768
    $region45: #{tpu_custom_call.1} parent=1 // pred_fallthru
      _
    // Predicated region
    $region46: #{tpu_custom_call.1} parent=1 // pred_check
      _
    $region47: #{tpu_custom_call.1} parent=1 // pred_check_branch
      %89 = sbr.rel (0) target = $region49
    $region48: #{tpu_custom_call.1} parent=1 // pred_region
      %90 = dma.done [#allocation9], 8192
    $region49: #{tpu_custom_call.1} parent=1 // pred_fallthru
      _
    %v91 = vld [vmem:[#allocation2] sm:$0xff]
    %v92 = vld [vmem:[#allocation2 + $0x8] sm:$0xff]
    %v93 = vld [vmem:[#allocation5] sm:$0xff]
    %v94 = vld [vmem:[#allocation5 + $0x8] sm:$0xff]
    %v95 = vld [vmem:[#allocation5 + $0x10] sm:$0xff]
    %v96 = vld [vmem:[#allocation5 + $0x18] sm:$0xff]
    %v97 = vld [vmem:[#allocation5 + $0x20] sm:$0xff]
    %v98 = vld [vmem:[#allocation5 + $0x28] sm:$0xff]
    %v99 = vld [vmem:[#allocation5 + $0x30] sm:$0xff]
    %v100 = vld [vmem:[#allocation5 + $0x38] sm:$0xff]
    %v101 = vld [vmem:[#allocation5 + $0x40] sm:$0xff]
    %v102 = vld [vmem:[#allocation5 + $0x48] sm:$0xff]
    %v103 = vld [vmem:[#allocation5 + $0x50] sm:$0xff]
    %v104 = vld [vmem:[#allocation5 + $0x58] sm:$0xff]
    %v105 = vld [vmem:[#allocation5 + $0x60] sm:$0xff]
    %v106 = vld [vmem:[#allocation5 + $0x68] sm:$0xff]
    %v107 = vld [vmem:[#allocation5 + $0x70] sm:$0xff]
    %v108 = vld [vmem:[#allocation5 + $0x78] sm:$0xff]
    %v109 = vld [vmem:[#allocation5 + $0x80] sm:$0xff]
    %v110 = vld [vmem:[#allocation5 + $0x88] sm:$0xff]
    %v111 = vld [vmem:[#allocation5 + $0x90] sm:$0xff]
    %v112 = vld [vmem:[#allocation5 + $0x98] sm:$0xff]
    %v113 = vld [vmem:[#allocation5 + $0xa0] sm:$0xff]
    %v114 = vld [vmem:[#allocation5 + $0xa8] sm:$0xff]
    %v115 = vld [vmem:[#allocation5 + $0xb0] sm:$0xff]
    %v116 = vld [vmem:[#allocation5 + $0xb8] sm:$0xff]
    %v117 = vld [vmem:[#allocation5 + $0xc0] sm:$0xff]
    %v118 = vld [vmem:[#allocation5 + $0xc8] sm:$0xff]
    %v119 = vld [vmem:[#allocation5 + $0xd0] sm:$0xff]
    %v120 = vld [vmem:[#allocation5 + $0xd8] sm:$0xff]
    %v121 = vld [vmem:[#allocation5 + $0xe0] sm:$0xff]
    %v122 = vld [vmem:[#allocation5 + $0xe8] sm:$0xff]
    %v123 = vld [vmem:[#allocation5 + $0xf0] sm:$0xff]
    %v124 = vld [vmem:[#allocation5 + $0xf8] sm:$0xff]
    %v125 = vld [vmem:[#allocation5 + $0x100] sm:$0xff]
    %v126 = vld [vmem:[#allocation5 + $0x108] sm:$0xff]
    %v127 = vld [vmem:[#allocation5 + $0x110] sm:$0xff]
    %v128 = vld [vmem:[#allocation5 + $0x118] sm:$0xff]
    %v129 = vld [vmem:[#allocation5 + $0x120] sm:$0xff]
    %v130 = vld [vmem:[#allocation5 + $0x128] sm:$0xff]
    %v131 = vld [vmem:[#allocation5 + $0x130] sm:$0xff]
    %v132 = vld [vmem:[#allocation5 + $0x138] sm:$0xff]
    %v133 = vld [vmem:[#allocation5 + $0x140] sm:$0xff]
    %v134 = vld [vmem:[#allocation5 + $0x148] sm:$0xff]
    %v135 = vld [vmem:[#allocation5 + $0x150] sm:$0xff]
    %v136 = vld [vmem:[#allocation5 + $0x158] sm:$0xff]
    %v137 = vld [vmem:[#allocation5 + $0x160] sm:$0xff]
    %v138 = vld [vmem:[#allocation5 + $0x168] sm:$0xff]
    %v139 = vld [vmem:[#allocation5 + $0x170] sm:$0xff]
    %v140 = vld [vmem:[#allocation5 + $0x178] sm:$0xff]
    %v141 = vld [vmem:[#allocation5 + $0x180] sm:$0xff]
    %v142 = vld [vmem:[#allocation5 + $0x188] sm:$0xff]
    %v143 = vld [vmem:[#allocation5 + $0x190] sm:$0xff]
    %v144 = vld [vmem:[#allocation5 + $0x198] sm:$0xff]
    %v145 = vld [vmem:[#allocation5 + $0x1a0] sm:$0xff]
    %v146 = vld [vmem:[#allocation5 + $0x1a8] sm:$0xff]
    %v147 = vld [vmem:[#allocation5 + $0x1b0] sm:$0xff]
    %v148 = vld [vmem:[#allocation5 + $0x1b8] sm:$0xff]
    %v149 = vld [vmem:[#allocation5 + $0x1c0] sm:$0xff]
    %v150 = vld [vmem:[#allocation5 + $0x1c8] sm:$0xff]
    %v151 = vld [vmem:[#allocation5 + $0x1d0] sm:$0xff]
    %v152 = vld [vmem:[#allocation5 + $0x1d8] sm:$0xff]
    %v153 = vld [vmem:[#allocation5 + $0x1e0] sm:$0xff]
    %v154 = vld [vmem:[#allocation5 + $0x1e8] sm:$0xff]
    %v155 = vld [vmem:[#allocation5 + $0x1f0] sm:$0xff]
    %v156 = vld [vmem:[#allocation5 + $0x1f8] sm:$0xff]
    %v157 = vld [vmem:[#allocation5 + $0x200] sm:$0xff]
    %v158 = vld [vmem:[#allocation5 + $0x208] sm:$0xff]
    %v159 = vld [vmem:[#allocation5 + $0x210] sm:$0xff]
    %v160 = vld [vmem:[#allocation5 + $0x218] sm:$0xff]
    %v161 = vld [vmem:[#allocation5 + $0x220] sm:$0xff]
    %v162 = vld [vmem:[#allocation5 + $0x228] sm:$0xff]
    %v163 = vld [vmem:[#allocation5 + $0x230] sm:$0xff]
    %v164 = vld [vmem:[#allocation5 + $0x238] sm:$0xff]
    %v165 = vld [vmem:[#allocation5 + $0x240] sm:$0xff]
    %v166 = vld [vmem:[#allocation5 + $0x248] sm:$0xff]
    %v167 = vld [vmem:[#allocation5 + $0x250] sm:$0xff]
    %v168 = vld [vmem:[#allocation5 + $0x258] sm:$0xff]
    %v169 = vld [vmem:[#allocation5 + $0x260] sm:$0xff]
    %v170 = vld [vmem:[#allocation5 + $0x268] sm:$0xff]
    %v171 = vld [vmem:[#allocation5 + $0x270] sm:$0xff]
    %v172 = vld [vmem:[#allocation5 + $0x278] sm:$0xff]
    %v173 = vld [vmem:[#allocation5 + $0x280] sm:$0xff]
    %v174 = vld [vmem:[#allocation5 + $0x288] sm:$0xff]
    %v175 = vld [vmem:[#allocation5 + $0x290] sm:$0xff]
    %v176 = vld [vmem:[#allocation5 + $0x298] sm:$0xff]
    %v177 = vld [vmem:[#allocation5 + $0x2a0] sm:$0xff]
    %v178 = vld [vmem:[#allocation5 + $0x2a8] sm:$0xff]
    %v179 = vld [vmem:[#allocation5 + $0x2b0] sm:$0xff]
    %v180 = vld [vmem:[#allocation5 + $0x2b8] sm:$0xff]
    %v181 = vld [vmem:[#allocation5 + $0x2c0] sm:$0xff]
    %v182 = vld [vmem:[#allocation5 + $0x2c8] sm:$0xff]
    %v183 = vld [vmem:[#allocation5 + $0x2d0] sm:$0xff]
    %v184 = vld [vmem:[#allocation5 + $0x2d8] sm:$0xff]
    %v185 = vld [vmem:[#allocation5 + $0x2e0] sm:$0xff]
    %v186 = vld [vmem:[#allocation5 + $0x2e8] sm:$0xff]
    %v187 = vld [vmem:[#allocation5 + $0x2f0] sm:$0xff]
    %v188 = vld [vmem:[#allocation5 + $0x2f8] sm:$0xff]
    %v189 = vld [vmem:[#allocation5 + $0x300] sm:$0xff]
    %v190 = vld [vmem:[#allocation5 + $0x308] sm:$0xff]
    %v191 = vld [vmem:[#allocation5 + $0x310] sm:$0xff]
    %v192 = vld [vmem:[#allocation5 + $0x318] sm:$0xff]
    %v193 = vld [vmem:[#allocation5 + $0x320] sm:$0xff]
    %v194 = vld [vmem:[#allocation5 + $0x328] sm:$0xff]
    %v195 = vld [vmem:[#allocation5 + $0x330] sm:$0xff]
    %v196 = vld [vmem:[#allocation5 + $0x338] sm:$0xff]
    %v197 = vld [vmem:[#allocation5 + $0x340] sm:$0xff]
    %v198 = vld [vmem:[#allocation5 + $0x348] sm:$0xff]
    %v199 = vld [vmem:[#allocation5 + $0x350] sm:$0xff]
    %v200 = vld [vmem:[#allocation5 + $0x358] sm:$0xff]
    %v201 = vld [vmem:[#allocation5 + $0x360] sm:$0xff]
    %v202 = vld [vmem:[#allocation5 + $0x368] sm:$0xff]
    %v203 = vld [vmem:[#allocation5 + $0x370] sm:$0xff]
    %v204 = vld [vmem:[#allocation5 + $0x378] sm:$0xff]
    %v205 = vld [vmem:[#allocation5 + $0x380] sm:$0xff]
    %v206 = vld [vmem:[#allocation5 + $0x388] sm:$0xff]
    %v207 = vld [vmem:[#allocation5 + $0x390] sm:$0xff]
    %v208 = vld [vmem:[#allocation5 + $0x398] sm:$0xff]
    %v209 = vld [vmem:[#allocation5 + $0x3a0] sm:$0xff]
    %v210 = vld [vmem:[#allocation5 + $0x3a8] sm:$0xff]
    %v211 = vld [vmem:[#allocation5 + $0x3b0] sm:$0xff]
    %v212 = vld [vmem:[#allocation5 + $0x3b8] sm:$0xff]
    %v213 = vld [vmem:[#allocation5 + $0x3c0] sm:$0xff]
    %v214 = vld [vmem:[#allocation5 + $0x3c8] sm:$0xff]
    %v215 = vld [vmem:[#allocation5 + $0x3d0] sm:$0xff]
    %v216 = vld [vmem:[#allocation5 + $0x3d8] sm:$0xff]
    %v217 = vld [vmem:[#allocation5 + $0x3e0] sm:$0xff]
    %v218 = vld [vmem:[#allocation5 + $0x3e8] sm:$0xff]
    %v219 = vld [vmem:[#allocation5 + $0x3f0] sm:$0xff]
    %v220 = vld [vmem:[#allocation5 + $0x3f8] sm:$0xff]
    %v221 = vld [vmem:[#allocation7] sm:$0xf]
    %v223 = vlaneseq
    %v224 = vshrl.u32 %v223, 7
    %v225 = vsub.s32 0, %v224
    %v226 = vrot.slane %v221, %v225
    %v227 = vlaneseq
    %v228 = vshrl.u32 %v227, 7
    %v229 = vsub.s32 1, %v228
    %v230 = vrot.slane %v221, %v229
    %v231 = vlaneseq
    %v232 = vshrl.u32 %v231, 7
    %v233 = vsub.s32 2, %v232
    %v234 = vrot.slane %v221, %v233
    %v235 = vlaneseq
    %v236 = vshrl.u32 %v235, 7
    %v237 = vsub.s32 3, %v236
    %v238 = vrot.slane %v221, %v237
    %243 = vmatprep.subr.mxu0 %v154
    %244 = vmatpush1.msra.mxu0 %v153
    %245 = vmatprep.subr.mxu0 %v150
    %246 = vmatpush1.msra.mxu0 %v149
    %247 = vmatprep.subr.mxu0 %v146
    %248 = vmatpush1.msra.mxu0 %v145
    %249 = vmatprep.subr.mxu0 %v142
    %250 = vmatpush1.msra.mxu0 %v141
    %251 = vmatprep.subr.mxu0 %v138
    %252 = vmatpush1.msra.mxu0 %v137
    %253 = vmatprep.subr.mxu0 %v134
    %254 = vmatpush1.msra.mxu0 %v133
    %255 = vmatprep.subr.mxu0 %v130
    %256 = vmatpush1.msra.mxu0 %v129
    %257 = vmatprep.subr.mxu0 %v126
    %258 = vmatpush1.msra.mxu0 %v125
    %259 = vmatprep.subr.mxu0 %v122
    %260 = vmatpush1.msra.mxu0 %v121
    %261 = vmatprep.subr.mxu0 %v118
    %262 = vmatpush1.msra.mxu0 %v117
    %263 = vmatprep.subr.mxu0 %v114
    %264 = vmatpush1.msra.mxu0 %v113
    %265 = vmatprep.subr.mxu0 %v110
    %266 = vmatpush1.msra.mxu0 %v109
    %267 = vmatprep.subr.mxu0 %v106
    %268 = vmatpush1.msra.mxu0 %v105
    %269 = vmatprep.subr.mxu0 %v102
    %270 = vmatpush1.msra.mxu0 %v101
    %271 = vmatprep.subr.mxu0 %v98
    %272 = vmatpush1.msra.mxu0 %v97
    %273 = vmatprep.subr.mxu0 %v94
    %274 = vmatpush1.msra.mxu0 %v93
    %275 = vmatprep.subr.mxu0 %v218
    %276 = vmatpush2.msra.mxu0 %v217
    %277 = vmatprep.subr.mxu0 %v214
    %278 = vmatpush2.msra.mxu0 %v213
    %279 = vmatprep.subr.mxu0 %v210
    %280 = vmatpush2.msra.mxu0 %v209
    %281 = vmatprep.subr.mxu0 %v206
    %282 = vmatpush2.msra.mxu0 %v205
    %283 = vmatprep.subr.mxu0 %v202
    %284 = vmatpush2.msra.mxu0 %v201
    %285 = vmatprep.subr.mxu0 %v198
    %286 = vmatpush2.msra.mxu0 %v197
    %287 = vmatprep.subr.mxu0 %v194
    %288 = vmatpush2.msra.mxu0 %v193
    %289 = vmatprep.subr.mxu0 %v190
    %290 = vmatpush2.msra.mxu0 %v189
    %291 = vmatprep.subr.mxu0 %v186
    %292 = vmatpush2.msra.mxu0 %v185
    %293 = vmatprep.subr.mxu0 %v182
    %294 = vmatpush2.msra.mxu0 %v181
    %295 = vmatprep.subr.mxu0 %v178
    %296 = vmatpush2.msra.mxu0 %v177
    %297 = vmatprep.subr.mxu0 %v174
    %298 = vmatpush2.msra.mxu0 %v173
    %299 = vmatprep.subr.mxu0 %v170
    %300 = vmatpush2.msra.mxu0 %v169
    %301 = vmatprep.subr.mxu0 %v166
    %302 = vmatpush2.msra.mxu0 %v165
    %303 = vmatprep.subr.mxu0 %v162
    %304 = vmatpush2.msra.mxu0 %v161
    %305 = vmatprep.subr.mxu0 %v158
    %306 = vmatpush2.msra.mxu0 %v157
    %307 = vmatprep.mubr.f32.mxu0 %v92
    %308 = vmatmul.mubr.f32.gmra.mxu0 %v91
    %v309 = vpop.f32.mrf.mxu0
    %v310 = vadd.f32 %v226, %v309
    %v311 = vpop.f32.mrf.mxu0
    %v312 = vadd.f32 %v230, %v311
    %313 = vdwg.mxu0
    %314 = vmatprep.subr.mxu0 %v156
    %315 = vmatpush1.msra.mxu0 %v155
    %316 = vmatprep.subr.mxu0 %v152
    %317 = vmatpush1.msra.mxu0 %v151
    %318 = vmatprep.subr.mxu0 %v148
    %319 = vmatpush1.msra.mxu0 %v147
    %320 = vmatprep.subr.mxu0 %v144
    %321 = vmatpush1.msra.mxu0 %v143
    %322 = vmatprep.subr.mxu0 %v140
    %323 = vmatpush1.msra.mxu0 %v139
    %324 = vmatprep.subr.mxu0 %v136
    %325 = vmatpush1.msra.mxu0 %v135
    %326 = vmatprep.subr.mxu0 %v132
    %327 = vmatpush1.msra.mxu0 %v131
    %328 = vmatprep.subr.mxu0 %v128
    %329 = vmatpush1.msra.mxu0 %v127
    %330 = vmatprep.subr.mxu0 %v124
    %331 = vmatpush1.msra.mxu0 %v123
    %332 = vmatprep.subr.mxu0 %v120
    %333 = vmatpush1.msra.mxu0 %v119
    %334 = vmatprep.subr.mxu0 %v116
    %335 = vmatpush1.msra.mxu0 %v115
    %336 = vmatprep.subr.mxu0 %v112
    %337 = vmatpush1.msra.mxu0 %v111
    %338 = vmatprep.subr.mxu0 %v108
    %339 = vmatpush1.msra.mxu0 %v107
    %340 = vmatprep.subr.mxu0 %v104
    %341 = vmatpush1.msra.mxu0 %v103
    %342 = vmatprep.subr.mxu0 %v100
    %343 = vmatpush1.msra.mxu0 %v99
    %344 = vmatprep.subr.mxu0 %v96
    %345 = vmatpush1.msra.mxu0 %v95
    %346 = vmatprep.subr.mxu0 %v220
    %347 = vmatpush2.msra.mxu0 %v219
    %348 = vmatprep.subr.mxu0 %v216
    %349 = vmatpush2.msra.mxu0 %v215
    %350 = vmatprep.subr.mxu0 %v212
    %351 = vmatpush2.msra.mxu0 %v211
    %352 = vmatprep.subr.mxu0 %v208
    %353 = vmatpush2.msra.mxu0 %v207
    %354 = vmatprep.subr.mxu0 %v204
    %355 = vmatpush2.msra.mxu0 %v203
    %356 = vmatprep.subr.mxu0 %v200
    %357 = vmatpush2.msra.mxu0 %v199
    %358 = vmatprep.subr.mxu0 %v196
    %359 = vmatpush2.msra.mxu0 %v195
    %360 = vmatprep.subr.mxu0 %v192
    %361 = vmatpush2.msra.mxu0 %v191
    %362 = vmatprep.subr.mxu0 %v188
    %363 = vmatpush2.msra.mxu0 %v187
    %364 = vmatprep.subr.mxu0 %v184
    %365 = vmatpush2.msra.mxu0 %v183
    %366 = vmatprep.subr.mxu0 %v180
    %367 = vmatpush2.msra.mxu0 %v179
    %368 = vmatprep.subr.mxu0 %v176
    %369 = vmatpush2.msra.mxu0 %v175
    %370 = vmatprep.subr.mxu0 %v172
    %371 = vmatpush2.msra.mxu0 %v171
    %372 = vmatprep.subr.mxu0 %v168
    %373 = vmatpush2.msra.mxu0 %v167
    %374 = vmatprep.subr.mxu0 %v164
    %375 = vmatpush2.msra.mxu0 %v163
    %376 = vmatprep.subr.mxu0 %v160
    %377 = vmatpush2.msra.mxu0 %v159
    %378 = vmatprep.mubr.f32.mxu0 %v92
    %379 = vmatmul.mubr.f32.gmra.mxu0 %v91
    %v380 = vpop.f32.mrf.mxu0
    %v381 = vadd.f32 %v234, %v380
    %v382 = vpop.f32.mrf.mxu0
    %v383 = vadd.f32 %v238, %v382
    %384 = vdwg.mxu0
    %v385 = vmax.f32 %v310, 0.0
    %v386 = vmax.f32 %v312, 0.0
    %v387 = vmax.f32 %v381, 0.0
    %v388 = vmax.f32 %v383, 0.0
    %v389 = vld [vmem:[#allocation8] sm:$0xff]
    %v390 = vld [vmem:[#allocation8 + $0x8] sm:$0xff]
    %v391 = vld [vmem:[#allocation8 + $0x10] sm:$0xff]
    %v392 = vld [vmem:[#allocation8 + $0x18] sm:$0xff]
    %v393 = vld [vmem:[#allocation8 + $0x20] sm:$0xff]
    %v394 = vld [vmem:[#allocation8 + $0x28] sm:$0xff]
    %v395 = vld [vmem:[#allocation8 + $0x30] sm:$0xff]
    %v396 = vld [vmem:[#allocation8 + $0x38] sm:$0xff]
    %v397 = vld [vmem:[#allocation8 + $0x40] sm:$0xff]
    %v398 = vld [vmem:[#allocation8 + $0x48] sm:$0xff]
    %v399 = vld [vmem:[#allocation8 + $0x50] sm:$0xff]
    %v400 = vld [vmem:[#allocation8 + $0x58] sm:$0xff]
    %v401 = vld [vmem:[#allocation8 + $0x60] sm:$0xff]
    %v402 = vld [vmem:[#allocation8 + $0x68] sm:$0xff]
    %v403 = vld [vmem:[#allocation8 + $0x70] sm:$0xff]
    %v404 = vld [vmem:[#allocation8 + $0x78] sm:$0xff]
    %v405 = vld [vmem:[#allocation8 + $0x80] sm:$0xff]
    %v406 = vld [vmem:[#allocation8 + $0x88] sm:$0xff]
    %v407 = vld [vmem:[#allocation8 + $0x90] sm:$0xff]
    %v408 = vld [vmem:[#allocation8 + $0x98] sm:$0xff]
    %v409 = vld [vmem:[#allocation8 + $0xa0] sm:$0xff]
    %v410 = vld [vmem:[#allocation8 + $0xa8] sm:$0xff]
    %v411 = vld [vmem:[#allocation8 + $0xb0] sm:$0xff]
    %v412 = vld [vmem:[#allocation8 + $0xb8] sm:$0xff]
    %v413 = vld [vmem:[#allocation8 + $0xc0] sm:$0xff]
    %v414 = vld [vmem:[#allocation8 + $0xc8] sm:$0xff]
    %v415 = vld [vmem:[#allocation8 + $0xd0] sm:$0xff]
    %v416 = vld [vmem:[#allocation8 + $0xd8] sm:$0xff]
    %v417 = vld [vmem:[#allocation8 + $0xe0] sm:$0xff]
    %v418 = vld [vmem:[#allocation8 + $0xe8] sm:$0xff]
    %v419 = vld [vmem:[#allocation8 + $0xf0] sm:$0xff]
    %v420 = vld [vmem:[#allocation8 + $0xf8] sm:$0xff]
    %v421 = vld [vmem:[#allocation8 + $0x100] sm:$0xff]
    %v422 = vld [vmem:[#allocation8 + $0x108] sm:$0xff]
    %v423 = vld [vmem:[#allocation8 + $0x110] sm:$0xff]
    %v424 = vld [vmem:[#allocation8 + $0x118] sm:$0xff]
    %v425 = vld [vmem:[#allocation8 + $0x120] sm:$0xff]
    %v426 = vld [vmem:[#allocation8 + $0x128] sm:$0xff]
    %v427 = vld [vmem:[#allocation8 + $0x130] sm:$0xff]
    %v428 = vld [vmem:[#allocation8 + $0x138] sm:$0xff]
    %v429 = vld [vmem:[#allocation8 + $0x140] sm:$0xff]
    %v430 = vld [vmem:[#allocation8 + $0x148] sm:$0xff]
    %v431 = vld [vmem:[#allocation8 + $0x150] sm:$0xff]
    %v432 = vld [vmem:[#allocation8 + $0x158] sm:$0xff]
    %v433 = vld [vmem:[#allocation8 + $0x160] sm:$0xff]
    %v434 = vld [vmem:[#allocation8 + $0x168] sm:$0xff]
    %v435 = vld [vmem:[#allocation8 + $0x170] sm:$0xff]
    %v436 = vld [vmem:[#allocation8 + $0x178] sm:$0xff]
    %v437 = vld [vmem:[#allocation8 + $0x180] sm:$0xff]
    %v438 = vld [vmem:[#allocation8 + $0x188] sm:$0xff]
    %v439 = vld [vmem:[#allocation8 + $0x190] sm:$0xff]
    %v440 = vld [vmem:[#allocation8 + $0x198] sm:$0xff]
    %v441 = vld [vmem:[#allocation8 + $0x1a0] sm:$0xff]
    %v442 = vld [vmem:[#allocation8 + $0x1a8] sm:$0xff]
    %v443 = vld [vmem:[#allocation8 + $0x1b0] sm:$0xff]
    %v444 = vld [vmem:[#allocation8 + $0x1b8] sm:$0xff]
    %v445 = vld [vmem:[#allocation8 + $0x1c0] sm:$0xff]
    %v446 = vld [vmem:[#allocation8 + $0x1c8] sm:$0xff]
    %v447 = vld [vmem:[#allocation8 + $0x1d0] sm:$0xff]
    %v448 = vld [vmem:[#allocation8 + $0x1d8] sm:$0xff]
    %v449 = vld [vmem:[#allocation8 + $0x1e0] sm:$0xff]
    %v450 = vld [vmem:[#allocation8 + $0x1e8] sm:$0xff]
    %v451 = vld [vmem:[#allocation8 + $0x1f0] sm:$0xff]
    %v452 = vld [vmem:[#allocation8 + $0x1f8] sm:$0xff]
    %v453 = vld [vmem:[#allocation8 + $0x200] sm:$0xff]
    %v454 = vld [vmem:[#allocation8 + $0x208] sm:$0xff]
    %v455 = vld [vmem:[#allocation8 + $0x210] sm:$0xff]
    %v456 = vld [vmem:[#allocation8 + $0x218] sm:$0xff]
    %v457 = vld [vmem:[#allocation8 + $0x220] sm:$0xff]
    %v458 = vld [vmem:[#allocation8 + $0x228] sm:$0xff]
    %v459 = vld [vmem:[#allocation8 + $0x230] sm:$0xff]
    %v460 = vld [vmem:[#allocation8 + $0x238] sm:$0xff]
    %v461 = vld [vmem:[#allocation8 + $0x240] sm:$0xff]
    %v462 = vld [vmem:[#allocation8 + $0x248] sm:$0xff]
    %v463 = vld [vmem:[#allocation8 + $0x250] sm:$0xff]
    %v464 = vld [vmem:[#allocation8 + $0x258] sm:$0xff]
    %v465 = vld [vmem:[#allocation8 + $0x260] sm:$0xff]
    %v466 = vld [vmem:[#allocation8 + $0x268] sm:$0xff]
    %v467 = vld [vmem:[#allocation8 + $0x270] sm:$0xff]
    %v468 = vld [vmem:[#allocation8 + $0x278] sm:$0xff]
    %v469 = vld [vmem:[#allocation8 + $0x280] sm:$0xff]
    %v470 = vld [vmem:[#allocation8 + $0x288] sm:$0xff]
    %v471 = vld [vmem:[#allocation8 + $0x290] sm:$0xff]
    %v472 = vld [vmem:[#allocation8 + $0x298] sm:$0xff]
    %v473 = vld [vmem:[#allocation8 + $0x2a0] sm:$0xff]
    %v474 = vld [vmem:[#allocation8 + $0x2a8] sm:$0xff]
    %v475 = vld [vmem:[#allocation8 + $0x2b0] sm:$0xff]
    %v476 = vld [vmem:[#allocation8 + $0x2b8] sm:$0xff]
    %v477 = vld [vmem:[#allocation8 + $0x2c0] sm:$0xff]
    %v478 = vld [vmem:[#allocation8 + $0x2c8] sm:$0xff]
    %v479 = vld [vmem:[#allocation8 + $0x2d0] sm:$0xff]
    %v480 = vld [vmem:[#allocation8 + $0x2d8] sm:$0xff]
    %v481 = vld [vmem:[#allocation8 + $0x2e0] sm:$0xff]
    %v482 = vld [vmem:[#allocation8 + $0x2e8] sm:$0xff]
    %v483 = vld [vmem:[#allocation8 + $0x2f0] sm:$0xff]
    %v484 = vld [vmem:[#allocation8 + $0x2f8] sm:$0xff]
    %v485 = vld [vmem:[#allocation8 + $0x300] sm:$0xff]
    %v486 = vld [vmem:[#allocation8 + $0x308] sm:$0xff]
    %v487 = vld [vmem:[#allocation8 + $0x310] sm:$0xff]
    %v488 = vld [vmem:[#allocation8 + $0x318] sm:$0xff]
    %v489 = vld [vmem:[#allocation8 + $0x320] sm:$0xff]
    %v490 = vld [vmem:[#allocation8 + $0x328] sm:$0xff]
    %v491 = vld [vmem:[#allocation8 + $0x330] sm:$0xff]
    %v492 = vld [vmem:[#allocation8 + $0x338] sm:$0xff]
    %v493 = vld [vmem:[#allocation8 + $0x340] sm:$0xff]
    %v494 = vld [vmem:[#allocation8 + $0x348] sm:$0xff]
    %v495 = vld [vmem:[#allocation8 + $0x350] sm:$0xff]
    %v496 = vld [vmem:[#allocation8 + $0x358] sm:$0xff]
    %v497 = vld [vmem:[#allocation8 + $0x360] sm:$0xff]
    %v498 = vld [vmem:[#allocation8 + $0x368] sm:$0xff]
    %v499 = vld [vmem:[#allocation8 + $0x370] sm:$0xff]
    %v500 = vld [vmem:[#allocation8 + $0x378] sm:$0xff]
    %v501 = vld [vmem:[#allocation8 + $0x380] sm:$0xff]
    %v502 = vld [vmem:[#allocation8 + $0x388] sm:$0xff]
    %v503 = vld [vmem:[#allocation8 + $0x390] sm:$0xff]
    %v504 = vld [vmem:[#allocation8 + $0x398] sm:$0xff]
    %v505 = vld [vmem:[#allocation8 + $0x3a0] sm:$0xff]
    %v506 = vld [vmem:[#allocation8 + $0x3a8] sm:$0xff]
    %v507 = vld [vmem:[#allocation8 + $0x3b0] sm:$0xff]
    %v508 = vld [vmem:[#allocation8 + $0x3b8] sm:$0xff]
    %v509 = vld [vmem:[#allocation8 + $0x3c0] sm:$0xff]
    %v510 = vld [vmem:[#allocation8 + $0x3c8] sm:$0xff]
    %v511 = vld [vmem:[#allocation8 + $0x3d0] sm:$0xff]
    %v512 = vld [vmem:[#allocation8 + $0x3d8] sm:$0xff]
    %v513 = vld [vmem:[#allocation8 + $0x3e0] sm:$0xff]
    %v514 = vld [vmem:[#allocation8 + $0x3e8] sm:$0xff]
    %v515 = vld [vmem:[#allocation8 + $0x3f0] sm:$0xff]
    %v516 = vld [vmem:[#allocation8 + $0x3f8] sm:$0xff]
    %v517 = vld [vmem:[#allocation8 + $0x400] sm:$0xff]
    %v518 = vld [vmem:[#allocation8 + $0x408] sm:$0xff]
    %v519 = vld [vmem:[#allocation8 + $0x410] sm:$0xff]
    %v520 = vld [vmem:[#allocation8 + $0x418] sm:$0xff]
    %v521 = vld [vmem:[#allocation8 + $0x420] sm:$0xff]
    %v522 = vld [vmem:[#allocation8 + $0x428] sm:$0xff]
    %v523 = vld [vmem:[#allocation8 + $0x430] sm:$0xff]
    %v524 = vld [vmem:[#allocation8 + $0x438] sm:$0xff]
    %v525 = vld [vmem:[#allocation8 + $0x440] sm:$0xff]
    %v526 = vld [vmem:[#allocation8 + $0x448] sm:$0xff]
    %v527 = vld [vmem:[#allocation8 + $0x450] sm:$0xff]
    %v528 = vld [vmem:[#allocation8 + $0x458] sm:$0xff]
    %v529 = vld [vmem:[#allocation8 + $0x460] sm:$0xff]
    %v530 = vld [vmem:[#allocation8 + $0x468] sm:$0xff]
    %v531 = vld [vmem:[#allocation8 + $0x470] sm:$0xff]
    %v532 = vld [vmem:[#allocation8 + $0x478] sm:$0xff]
    %v533 = vld [vmem:[#allocation8 + $0x480] sm:$0xff]
    %v534 = vld [vmem:[#allocation8 + $0x488] sm:$0xff]
    %v535 = vld [vmem:[#allocation8 + $0x490] sm:$0xff]
    %v536 = vld [vmem:[#allocation8 + $0x498] sm:$0xff]
    %v537 = vld [vmem:[#allocation8 + $0x4a0] sm:$0xff]
    %v538 = vld [vmem:[#allocation8 + $0x4a8] sm:$0xff]
    %v539 = vld [vmem:[#allocation8 + $0x4b0] sm:$0xff]
    %v540 = vld [vmem:[#allocation8 + $0x4b8] sm:$0xff]
    %v541 = vld [vmem:[#allocation8 + $0x4c0] sm:$0xff]
    %v542 = vld [vmem:[#allocation8 + $0x4c8] sm:$0xff]
    %v543 = vld [vmem:[#allocation8 + $0x4d0] sm:$0xff]
    %v544 = vld [vmem:[#allocation8 + $0x4d8] sm:$0xff]
    %v545 = vld [vmem:[#allocation8 + $0x4e0] sm:$0xff]
    %v546 = vld [vmem:[#allocation8 + $0x4e8] sm:$0xff]
    %v547 = vld [vmem:[#allocation8 + $0x4f0] sm:$0xff]
    %v548 = vld [vmem:[#allocation8 + $0x4f8] sm:$0xff]
    %v549 = vld [vmem:[#allocation8 + $0x500] sm:$0xff]
    %v550 = vld [vmem:[#allocation8 + $0x508] sm:$0xff]
    %v551 = vld [vmem:[#allocation8 + $0x510] sm:$0xff]
    %v552 = vld [vmem:[#allocation8 + $0x518] sm:$0xff]
    %v553 = vld [vmem:[#allocation8 + $0x520] sm:$0xff]
    %v554 = vld [vmem:[#allocation8 + $0x528] sm:$0xff]
    %v555 = vld [vmem:[#allocation8 + $0x530] sm:$0xff]
    %v556 = vld [vmem:[#allocation8 + $0x538] sm:$0xff]
    %v557 = vld [vmem:[#allocation8 + $0x540] sm:$0xff]
    %v558 = vld [vmem:[#allocation8 + $0x548] sm:$0xff]
    %v559 = vld [vmem:[#allocation8 + $0x550] sm:$0xff]
    %v560 = vld [vmem:[#allocation8 + $0x558] sm:$0xff]
    %v561 = vld [vmem:[#allocation8 + $0x560] sm:$0xff]
    %v562 = vld [vmem:[#allocation8 + $0x568] sm:$0xff]
    %v563 = vld [vmem:[#allocation8 + $0x570] sm:$0xff]
    %v564 = vld [vmem:[#allocation8 + $0x578] sm:$0xff]
    %v565 = vld [vmem:[#allocation8 + $0x580] sm:$0xff]
    %v566 = vld [vmem:[#allocation8 + $0x588] sm:$0xff]
    %v567 = vld [vmem:[#allocation8 + $0x590] sm:$0xff]
    %v568 = vld [vmem:[#allocation8 + $0x598] sm:$0xff]
    %v569 = vld [vmem:[#allocation8 + $0x5a0] sm:$0xff]
    %v570 = vld [vmem:[#allocation8 + $0x5a8] sm:$0xff]
    %v571 = vld [vmem:[#allocation8 + $0x5b0] sm:$0xff]
    %v572 = vld [vmem:[#allocation8 + $0x5b8] sm:$0xff]
    %v573 = vld [vmem:[#allocation8 + $0x5c0] sm:$0xff]
    %v574 = vld [vmem:[#allocation8 + $0x5c8] sm:$0xff]
    %v575 = vld [vmem:[#allocation8 + $0x5d0] sm:$0xff]
    %v576 = vld [vmem:[#allocation8 + $0x5d8] sm:$0xff]
    %v577 = vld [vmem:[#allocation8 + $0x5e0] sm:$0xff]
    %v578 = vld [vmem:[#allocation8 + $0x5e8] sm:$0xff]
    %v579 = vld [vmem:[#allocation8 + $0x5f0] sm:$0xff]
    %v580 = vld [vmem:[#allocation8 + $0x5f8] sm:$0xff]
    %v581 = vld [vmem:[#allocation8 + $0x600] sm:$0xff]
    %v582 = vld [vmem:[#allocation8 + $0x608] sm:$0xff]
    %v583 = vld [vmem:[#allocation8 + $0x610] sm:$0xff]
    %v584 = vld [vmem:[#allocation8 + $0x618] sm:$0xff]
    %v585 = vld [vmem:[#allocation8 + $0x620] sm:$0xff]
    %v586 = vld [vmem:[#allocation8 + $0x628] sm:$0xff]
    %v587 = vld [vmem:[#allocation8 + $0x630] sm:$0xff]
    %v588 = vld [vmem:[#allocation8 + $0x638] sm:$0xff]
    %v589 = vld [vmem:[#allocation8 + $0x640] sm:$0xff]
    %v590 = vld [vmem:[#allocation8 + $0x648] sm:$0xff]
    %v591 = vld [vmem:[#allocation8 + $0x650] sm:$0xff]
    %v592 = vld [vmem:[#allocation8 + $0x658] sm:$0xff]
    %v593 = vld [vmem:[#allocation8 + $0x660] sm:$0xff]
    %v594 = vld [vmem:[#allocation8 + $0x668] sm:$0xff]
    %v595 = vld [vmem:[#allocation8 + $0x670] sm:$0xff]
    %v596 = vld [vmem:[#allocation8 + $0x678] sm:$0xff]
    %v597 = vld [vmem:[#allocation8 + $0x680] sm:$0xff]
    %v598 = vld [vmem:[#allocation8 + $0x688] sm:$0xff]
    %v599 = vld [vmem:[#allocation8 + $0x690] sm:$0xff]
    %v600 = vld [vmem:[#allocation8 + $0x698] sm:$0xff]
    %v601 = vld [vmem:[#allocation8 + $0x6a0] sm:$0xff]
    %v602 = vld [vmem:[#allocation8 + $0x6a8] sm:$0xff]
    %v603 = vld [vmem:[#allocation8 + $0x6b0] sm:$0xff]
    %v604 = vld [vmem:[#allocation8 + $0x6b8] sm:$0xff]
    %v605 = vld [vmem:[#allocation8 + $0x6c0] sm:$0xff]
    %v606 = vld [vmem:[#allocation8 + $0x6c8] sm:$0xff]
    %v607 = vld [vmem:[#allocation8 + $0x6d0] sm:$0xff]
    %v608 = vld [vmem:[#allocation8 + $0x6d8] sm:$0xff]
    %v609 = vld [vmem:[#allocation8 + $0x6e0] sm:$0xff]
    %v610 = vld [vmem:[#allocation8 + $0x6e8] sm:$0xff]
    %v611 = vld [vmem:[#allocation8 + $0x6f0] sm:$0xff]
    %v612 = vld [vmem:[#allocation8 + $0x6f8] sm:$0xff]
    %v613 = vld [vmem:[#allocation8 + $0x700] sm:$0xff]
    %v614 = vld [vmem:[#allocation8 + $0x708] sm:$0xff]
    %v615 = vld [vmem:[#allocation8 + $0x710] sm:$0xff]
    %v616 = vld [vmem:[#allocation8 + $0x718] sm:$0xff]
    %v617 = vld [vmem:[#allocation8 + $0x720] sm:$0xff]
    %v618 = vld [vmem:[#allocation8 + $0x728] sm:$0xff]
    %v619 = vld [vmem:[#allocation8 + $0x730] sm:$0xff]
    %v620 = vld [vmem:[#allocation8 + $0x738] sm:$0xff]
    %v621 = vld [vmem:[#allocation8 + $0x740] sm:$0xff]
    %v622 = vld [vmem:[#allocation8 + $0x748] sm:$0xff]
    %v623 = vld [vmem:[#allocation8 + $0x750] sm:$0xff]
    %v624 = vld [vmem:[#allocation8 + $0x758] sm:$0xff]
    %v625 = vld [vmem:[#allocation8 + $0x760] sm:$0xff]
    %v626 = vld [vmem:[#allocation8 + $0x768] sm:$0xff]
    %v627 = vld [vmem:[#allocation8 + $0x770] sm:$0xff]
    %v628 = vld [vmem:[#allocation8 + $0x778] sm:$0xff]
    %v629 = vld [vmem:[#allocation8 + $0x780] sm:$0xff]
    %v630 = vld [vmem:[#allocation8 + $0x788] sm:$0xff]
    %v631 = vld [vmem:[#allocation8 + $0x790] sm:$0xff]
    %v632 = vld [vmem:[#allocation8 + $0x798] sm:$0xff]
    %v633 = vld [vmem:[#allocation8 + $0x7a0] sm:$0xff]
    %v634 = vld [vmem:[#allocation8 + $0x7a8] sm:$0xff]
    %v635 = vld [vmem:[#allocation8 + $0x7b0] sm:$0xff]
    %v636 = vld [vmem:[#allocation8 + $0x7b8] sm:$0xff]
    %v637 = vld [vmem:[#allocation8 + $0x7c0] sm:$0xff]
    %v638 = vld [vmem:[#allocation8 + $0x7c8] sm:$0xff]
    %v639 = vld [vmem:[#allocation8 + $0x7d0] sm:$0xff]
    %v640 = vld [vmem:[#allocation8 + $0x7d8] sm:$0xff]
    %v641 = vld [vmem:[#allocation8 + $0x7e0] sm:$0xff]
    %v642 = vld [vmem:[#allocation8 + $0x7e8] sm:$0xff]
    %v643 = vld [vmem:[#allocation8 + $0x7f0] sm:$0xff]
    %v644 = vld [vmem:[#allocation8 + $0x7f8] sm:$0xff]
    %v645 = vld [vmem:[%s4] sm:$0xf]
    %v647 = vlaneseq
    %v648 = vshrl.u32 %v647, 7
    %v649 = vsub.s32 0, %v648
    %v650 = vrot.slane %v645, %v649
    %v651 = vlaneseq
    %v652 = vshrl.u32 %v651, 7
    %v653 = vsub.s32 1, %v652
    %v654 = vrot.slane %v645, %v653
    %v655 = vlaneseq
    %v656 = vshrl.u32 %v655, 7
    %v657 = vsub.s32 2, %v656
    %v658 = vrot.slane %v645, %v657
    %v659 = vlaneseq
    %v660 = vshrl.u32 %v659, 7
    %v661 = vsub.s32 3, %v660
    %v662 = vrot.slane %v645, %v661
    %667 = vmatprep.subr.mxu0 %v450
    %668 = vmatpush1.msra.mxu0 %v449
    %669 = vmatprep.subr.mxu0 %v446
    %670 = vmatpush1.msra.mxu0 %v445
    %671 = vmatprep.subr.mxu0 %v442
    %672 = vmatpush1.msra.mxu0 %v441
    %673 = vmatprep.subr.mxu0 %v438
    %674 = vmatpush1.msra.mxu0 %v437
    %675 = vmatprep.subr.mxu0 %v434
    %676 = vmatpush1.msra.mxu0 %v433
    %677 = vmatprep.subr.mxu0 %v430
    %678 = vmatpush1.msra.mxu0 %v429
    %679 = vmatprep.subr.mxu0 %v426
    %680 = vmatpush1.msra.mxu0 %v425
    %681 = vmatprep.subr.mxu0 %v422
    %682 = vmatpush1.msra.mxu0 %v421
    %683 = vmatprep.subr.mxu0 %v418
    %684 = vmatpush1.msra.mxu0 %v417
    %685 = vmatprep.subr.mxu0 %v414
    %686 = vmatpush1.msra.mxu0 %v413
    %687 = vmatprep.subr.mxu0 %v410
    %688 = vmatpush1.msra.mxu0 %v409
    %689 = vmatprep.subr.mxu0 %v406
    %690 = vmatpush1.msra.mxu0 %v405
    %691 = vmatprep.subr.mxu0 %v402
    %692 = vmatpush1.msra.mxu0 %v401
    %693 = vmatprep.subr.mxu0 %v398
    %694 = vmatpush1.msra.mxu0 %v397
    %695 = vmatprep.subr.mxu0 %v394
    %696 = vmatpush1.msra.mxu0 %v393
    %697 = vmatprep.subr.mxu0 %v390
    %698 = vmatpush1.msra.mxu0 %v389
    %699 = vmatprep.subr.mxu0 %v514
    %700 = vmatpush2.msra.mxu0 %v513
    %701 = vmatprep.subr.mxu0 %v510
    %702 = vmatpush2.msra.mxu0 %v509
    %703 = vmatprep.subr.mxu0 %v506
    %704 = vmatpush2.msra.mxu0 %v505
    %705 = vmatprep.subr.mxu0 %v502
    %706 = vmatpush2.msra.mxu0 %v501
    %707 = vmatprep.subr.mxu0 %v498
    %708 = vmatpush2.msra.mxu0 %v497
    %709 = vmatprep.subr.mxu0 %v494
    %710 = vmatpush2.msra.mxu0 %v493
    %711 = vmatprep.subr.mxu0 %v490
    %712 = vmatpush2.msra.mxu0 %v489
    %713 = vmatprep.subr.mxu0 %v486
    %714 = vmatpush2.msra.mxu0 %v485
    %715 = vmatprep.subr.mxu0 %v482
    %716 = vmatpush2.msra.mxu0 %v481
    %717 = vmatprep.subr.mxu0 %v478
    %718 = vmatpush2.msra.mxu0 %v477
    %719 = vmatprep.subr.mxu0 %v474
    %720 = vmatpush2.msra.mxu0 %v473
    %721 = vmatprep.subr.mxu0 %v470
    %722 = vmatpush2.msra.mxu0 %v469
    %723 = vmatprep.subr.mxu0 %v466
    %724 = vmatpush2.msra.mxu0 %v465
    %725 = vmatprep.subr.mxu0 %v462
    %726 = vmatpush2.msra.mxu0 %v461
    %727 = vmatprep.subr.mxu0 %v458
    %728 = vmatpush2.msra.mxu0 %v457
    %729 = vmatprep.subr.mxu0 %v454
    %730 = vmatpush2.msra.mxu0 %v453
    %731 = vmatprep.mubr.f32.mxu0 %v386
    %732 = vmatmul.mubr.f32.gmra.mxu0 %v385
    %v733 = vpop.f32.mrf.mxu0
    %v734 = vadd.f32 %v650, %v733
    %v735 = vpop.f32.mrf.mxu0
    %v736 = vadd.f32 %v654, %v735
    %737 = vdwg.mxu0
    %738 = vmatprep.subr.mxu0 %v578
    %739 = vmatpush1.msra.mxu0 %v577
    %740 = vmatprep.subr.mxu0 %v574
    %741 = vmatpush1.msra.mxu0 %v573
    %742 = vmatprep.subr.mxu0 %v570
    %743 = vmatpush1.msra.mxu0 %v569
    %744 = vmatprep.subr.mxu0 %v566
    %745 = vmatpush1.msra.mxu0 %v565
    %746 = vmatprep.subr.mxu0 %v562
    %747 = vmatpush1.msra.mxu0 %v561
    %748 = vmatprep.subr.mxu0 %v558
    %749 = vmatpush1.msra.mxu0 %v557
    %750 = vmatprep.subr.mxu0 %v554
    %751 = vmatpush1.msra.mxu0 %v553
    %752 = vmatprep.subr.mxu0 %v550
    %753 = vmatpush1.msra.mxu0 %v549
    %754 = vmatprep.subr.mxu0 %v546
    %755 = vmatpush1.msra.mxu0 %v545
    %756 = vmatprep.subr.mxu0 %v542
    %757 = vmatpush1.msra.mxu0 %v541
    %758 = vmatprep.subr.mxu0 %v538
    %759 = vmatpush1.msra.mxu0 %v537
    %760 = vmatprep.subr.mxu0 %v534
    %761 = vmatpush1.msra.mxu0 %v533
    %762 = vmatprep.subr.mxu0 %v530
    %763 = vmatpush1.msra.mxu0 %v529
    %764 = vmatprep.subr.mxu0 %v526
    %765 = vmatpush1.msra.mxu0 %v525
    %766 = vmatprep.subr.mxu0 %v522
    %767 = vmatpush1.msra.mxu0 %v521
    %768 = vmatprep.subr.mxu0 %v518
    %769 = vmatpush1.msra.mxu0 %v517
    %770 = vmatprep.subr.mxu0 %v642
    %771 = vmatpush2.msra.mxu0 %v641
    %772 = vmatprep.subr.mxu0 %v638
    %773 = vmatpush2.msra.mxu0 %v637
    %774 = vmatprep.subr.mxu0 %v634
    %775 = vmatpush2.msra.mxu0 %v633
    %776 = vmatprep.subr.mxu0 %v630
    %777 = vmatpush2.msra.mxu0 %v629
    %778 = vmatprep.subr.mxu0 %v626
    %779 = vmatpush2.msra.mxu0 %v625
    %780 = vmatprep.subr.mxu0 %v622
    %781 = vmatpush2.msra.mxu0 %v621
    %782 = vmatprep.subr.mxu0 %v618
    %783 = vmatpush2.msra.mxu0 %v617
    %784 = vmatprep.subr.mxu0 %v614
    %785 = vmatpush2.msra.mxu0 %v613
    %786 = vmatprep.subr.mxu0 %v610
    %787 = vmatpush2.msra.mxu0 %v609
    %788 = vmatprep.subr.mxu0 %v606
    %789 = vmatpush2.msra.mxu0 %v605
    %790 = vmatprep.subr.mxu0 %v602
    %791 = vmatpush2.msra.mxu0 %v601
    %792 = vmatprep.subr.mxu0 %v598
    %793 = vmatpush2.msra.mxu0 %v597
    %794 = vmatprep.subr.mxu0 %v594
    %795 = vmatpush2.msra.mxu0 %v593
    %796 = vmatprep.subr.mxu0 %v590
    %797 = vmatpush2.msra.mxu0 %v589
    %798 = vmatprep.subr.mxu0 %v586
    %799 = vmatpush2.msra.mxu0 %v585
    %800 = vmatprep.subr.mxu0 %v582
    %801 = vmatpush2.msra.mxu0 %v581
    %802 = vmatprep.mubr.f32.mxu0 %v388
    %803 = vmatmul.mubr.f32.gmra.mxu0 %v387
    %v804 = vpop.f32.mrf.mxu0
    %v805 = vadd.f32 %v734, %v804
    %v806 = vpop.f32.mrf.mxu0
    %v807 = vadd.f32 %v736, %v806
    %808 = vdwg.mxu0
    %809 = vmatprep.subr.mxu0 %v452
    %810 = vmatpush1.msra.mxu0 %v451
    %811 = vmatprep.subr.mxu0 %v448
    %812 = vmatpush1.msra.mxu0 %v447
    %813 = vmatprep.subr.mxu0 %v444
    %814 = vmatpush1.msra.mxu0 %v443
    %815 = vmatprep.subr.mxu0 %v440
    %816 = vmatpush1.msra.mxu0 %v439
    %817 = vmatprep.subr.mxu0 %v436
    %818 = vmatpush1.msra.mxu0 %v435
    %819 = vmatprep.subr.mxu0 %v432
    %820 = vmatpush1.msra.mxu0 %v431
    %821 = vmatprep.subr.mxu0 %v428
    %822 = vmatpush1.msra.mxu0 %v427
    %823 = vmatprep.subr.mxu0 %v424
    %824 = vmatpush1.msra.mxu0 %v423
    %825 = vmatprep.subr.mxu0 %v420
    %826 = vmatpush1.msra.mxu0 %v419
    %827 = vmatprep.subr.mxu0 %v416
    %828 = vmatpush1.msra.mxu0 %v415
    %829 = vmatprep.subr.mxu0 %v412
    %830 = vmatpush1.msra.mxu0 %v411
    %831 = vmatprep.subr.mxu0 %v408
    %832 = vmatpush1.msra.mxu0 %v407
    %833 = vmatprep.subr.mxu0 %v404
    %834 = vmatpush1.msra.mxu0 %v403
    %835 = vmatprep.subr.mxu0 %v400
    %836 = vmatpush1.msra.mxu0 %v399
    %837 = vmatprep.subr.mxu0 %v396
    %838 = vmatpush1.msra.mxu0 %v395
    %839 = vmatprep.subr.mxu0 %v392
    %840 = vmatpush1.msra.mxu0 %v391
    %841 = vmatprep.subr.mxu0 %v516
    %842 = vmatpush2.msra.mxu0 %v515
    %843 = vmatprep.subr.mxu0 %v512
    %844 = vmatpush2.msra.mxu0 %v511
    %845 = vmatprep.subr.mxu0 %v508
    %846 = vmatpush2.msra.mxu0 %v507
    %847 = vmatprep.subr.mxu0 %v504
    %848 = vmatpush2.msra.mxu0 %v503
    %849 = vmatprep.subr.mxu0 %v500
    %850 = vmatpush2.msra.mxu0 %v499
    %851 = vmatprep.subr.mxu0 %v496
    %852 = vmatpush2.msra.mxu0 %v495
    %853 = vmatprep.subr.mxu0 %v492
    %854 = vmatpush2.msra.mxu0 %v491
    %855 = vmatprep.subr.mxu0 %v488
    %856 = vmatpush2.msra.mxu0 %v487
    %857 = vmatprep.subr.mxu0 %v484
    %858 = vmatpush2.msra.mxu0 %v483
    %859 = vmatprep.subr.mxu0 %v480
    %860 = vmatpush2.msra.mxu0 %v479
    %861 = vmatprep.subr.mxu0 %v476
    %862 = vmatpush2.msra.mxu0 %v475
    %863 = vmatprep.subr.mxu0 %v472
    %864 = vmatpush2.msra.mxu0 %v471
    %865 = vmatprep.subr.mxu0 %v468
    %866 = vmatpush2.msra.mxu0 %v467
    %867 = vmatprep.subr.mxu0 %v464
    %868 = vmatpush2.msra.mxu0 %v463
    %869 = vmatprep.subr.mxu0 %v460
    %870 = vmatpush2.msra.mxu0 %v459
    %871 = vmatprep.subr.mxu0 %v456
    %872 = vmatpush2.msra.mxu0 %v455
    %873 = vmatprep.mubr.f32.mxu0 %v386
    %874 = vmatmul.mubr.f32.gmra.mxu0 %v385
    %v875 = vpop.f32.mrf.mxu0
    %v876 = vadd.f32 %v658, %v875
    %v877 = vpop.f32.mrf.mxu0
    %v878 = vadd.f32 %v662, %v877
    %879 = vdwg.mxu0
    %880 = vmatprep.subr.mxu0 %v580
    %881 = vmatpush1.msra.mxu0 %v579
    %882 = vmatprep.subr.mxu0 %v576
    %883 = vmatpush1.msra.mxu0 %v575
    %884 = vmatprep.subr.mxu0 %v572
    %885 = vmatpush1.msra.mxu0 %v571
    %886 = vmatprep.subr.mxu0 %v568
    %887 = vmatpush1.msra.mxu0 %v567
    %888 = vmatprep.subr.mxu0 %v564
    %889 = vmatpush1.msra.mxu0 %v563
    %890 = vmatprep.subr.mxu0 %v560
    %891 = vmatpush1.msra.mxu0 %v559
    %892 = vmatprep.subr.mxu0 %v556
    %893 = vmatpush1.msra.mxu0 %v555
    %894 = vmatprep.subr.mxu0 %v552
    %895 = vmatpush1.msra.mxu0 %v551
    %896 = vmatprep.subr.mxu0 %v548
    %897 = vmatpush1.msra.mxu0 %v547
    %898 = vmatprep.subr.mxu0 %v544
    %899 = vmatpush1.msra.mxu0 %v543
    %900 = vmatprep.subr.mxu0 %v540
    %901 = vmatpush1.msra.mxu0 %v539
    %902 = vmatprep.subr.mxu0 %v536
    %903 = vmatpush1.msra.mxu0 %v535
    %904 = vmatprep.subr.mxu0 %v532
    %905 = vmatpush1.msra.mxu0 %v531
    %906 = vmatprep.subr.mxu0 %v528
    %907 = vmatpush1.msra.mxu0 %v527
    %908 = vmatprep.subr.mxu0 %v524
    %909 = vmatpush1.msra.mxu0 %v523
    %910 = vmatprep.subr.mxu0 %v520
    %911 = vmatpush1.msra.mxu0 %v519
    %912 = vmatprep.subr.mxu0 %v644
    %913 = vmatpush2.msra.mxu0 %v643
    %914 = vmatprep.subr.mxu0 %v640
    %915 = vmatpush2.msra.mxu0 %v639
    %916 = vmatprep.subr.mxu0 %v636
    %917 = vmatpush2.msra.mxu0 %v635
    %918 = vmatprep.subr.mxu0 %v632
    %919 = vmatpush2.msra.mxu0 %v631
    %920 = vmatprep.subr.mxu0 %v628
    %921 = vmatpush2.msra.mxu0 %v627
    %922 = vmatprep.subr.mxu0 %v624
    %923 = vmatpush2.msra.mxu0 %v623
    %924 = vmatprep.subr.mxu0 %v620
    %925 = vmatpush2.msra.mxu0 %v619
    %926 = vmatprep.subr.mxu0 %v616
    %927 = vmatpush2.msra.mxu0 %v615
    %928 = vmatprep.subr.mxu0 %v612
    %929 = vmatpush2.msra.mxu0 %v611
    %930 = vmatprep.subr.mxu0 %v608
    %931 = vmatpush2.msra.mxu0 %v607
    %932 = vmatprep.subr.mxu0 %v604
    %933 = vmatpush2.msra.mxu0 %v603
    %934 = vmatprep.subr.mxu0 %v600
    %935 = vmatpush2.msra.mxu0 %v599
    %936 = vmatprep.subr.mxu0 %v596
    %937 = vmatpush2.msra.mxu0 %v595
    %938 = vmatprep.subr.mxu0 %v592
    %939 = vmatpush2.msra.mxu0 %v591
    %940 = vmatprep.subr.mxu0 %v588
    %941 = vmatpush2.msra.mxu0 %v587
    %942 = vmatprep.subr.mxu0 %v584
    %943 = vmatpush2.msra.mxu0 %v583
    %944 = vmatprep.mubr.f32.mxu0 %v388
    %945 = vmatmul.mubr.f32.gmra.mxu0 %v387
    %v946 = vpop.f32.mrf.mxu0
    %v947 = vadd.f32 %v876, %v946
    %v948 = vpop.f32.mrf.mxu0
    %v949 = vadd.f32 %v878, %v948
    %950 = vdwg.mxu0
    %v951 = vmax.f32 %v805, 0.0
    %v952 = vmax.f32 %v807, 0.0
    %v953 = vmax.f32 %v947, 0.0
    %v954 = vmax.f32 %v949, 0.0
    %v955 = vld [vmem:[#allocation10] sm:$0xff]
    %v956 = vld [vmem:[#allocation10 + $0x8] sm:$0xff]
    %v957 = vld [vmem:[#allocation10 + $0x10] sm:$0xff]
    %v958 = vld [vmem:[#allocation10 + $0x18] sm:$0xff]
    %v959 = vld [vmem:[#allocation10 + $0x20] sm:$0xff]
    %v960 = vld [vmem:[#allocation10 + $0x28] sm:$0xff]
    %v961 = vld [vmem:[#allocation10 + $0x30] sm:$0xff]
    %v962 = vld [vmem:[#allocation10 + $0x38] sm:$0xff]
    %v963 = vld [vmem:[#allocation10 + $0x40] sm:$0xff]
    %v964 = vld [vmem:[#allocation10 + $0x48] sm:$0xff]
    %v965 = vld [vmem:[#allocation10 + $0x50] sm:$0xff]
    %v966 = vld [vmem:[#allocation10 + $0x58] sm:$0xff]
    %v967 = vld [vmem:[#allocation10 + $0x60] sm:$0xff]
    %v968 = vld [vmem:[#allocation10 + $0x68] sm:$0xff]
    %v969 = vld [vmem:[#allocation10 + $0x70] sm:$0xff]
    %v970 = vld [vmem:[#allocation10 + $0x78] sm:$0xff]
    %v971 = vld [vmem:[#allocation10 + $0x80] sm:$0xff]
    %v972 = vld [vmem:[#allocation10 + $0x88] sm:$0xff]
    %v973 = vld [vmem:[#allocation10 + $0x90] sm:$0xff]
    %v974 = vld [vmem:[#allocation10 + $0x98] sm:$0xff]
    %v975 = vld [vmem:[#allocation10 + $0xa0] sm:$0xff]
    %v976 = vld [vmem:[#allocation10 + $0xa8] sm:$0xff]
    %v977 = vld [vmem:[#allocation10 + $0xb0] sm:$0xff]
    %v978 = vld [vmem:[#allocation10 + $0xb8] sm:$0xff]
    %v979 = vld [vmem:[#allocation10 + $0xc0] sm:$0xff]
    %v980 = vld [vmem:[#allocation10 + $0xc8] sm:$0xff]
    %v981 = vld [vmem:[#allocation10 + $0xd0] sm:$0xff]
    %v982 = vld [vmem:[#allocation10 + $0xd8] sm:$0xff]
    %v983 = vld [vmem:[#allocation10 + $0xe0] sm:$0xff]
    %v984 = vld [vmem:[#allocation10 + $0xe8] sm:$0xff]
    %v985 = vld [vmem:[#allocation10 + $0xf0] sm:$0xff]
    %v986 = vld [vmem:[#allocation10 + $0xf8] sm:$0xff]
    %v987 = vld [vmem:[#allocation10 + $0x100] sm:$0xff]
    %v988 = vld [vmem:[#allocation10 + $0x108] sm:$0xff]
    %v989 = vld [vmem:[#allocation10 + $0x110] sm:$0xff]
    %v990 = vld [vmem:[#allocation10 + $0x118] sm:$0xff]
    %v991 = vld [vmem:[#allocation10 + $0x120] sm:$0xff]
    %v992 = vld [vmem:[#allocation10 + $0x128] sm:$0xff]
    %v993 = vld [vmem:[#allocation10 + $0x130] sm:$0xff]
    %v994 = vld [vmem:[#allocation10 + $0x138] sm:$0xff]
    %v995 = vld [vmem:[#allocation10 + $0x140] sm:$0xff]
    %v996 = vld [vmem:[#allocation10 + $0x148] sm:$0xff]
    %v997 = vld [vmem:[#allocation10 + $0x150] sm:$0xff]
    %v998 = vld [vmem:[#allocation10 + $0x158] sm:$0xff]
    %v999 = vld [vmem:[#allocation10 + $0x160] sm:$0xff]
    %v1000 = vld [vmem:[#allocation10 + $0x168] sm:$0xff]
    %v1001 = vld [vmem:[#allocation10 + $0x170] sm:$0xff]
    %v1002 = vld [vmem:[#allocation10 + $0x178] sm:$0xff]
    %v1003 = vld [vmem:[#allocation10 + $0x180] sm:$0xff]
    %v1004 = vld [vmem:[#allocation10 + $0x188] sm:$0xff]
    %v1005 = vld [vmem:[#allocation10 + $0x190] sm:$0xff]
    %v1006 = vld [vmem:[#allocation10 + $0x198] sm:$0xff]
    %v1007 = vld [vmem:[#allocation10 + $0x1a0] sm:$0xff]
    %v1008 = vld [vmem:[#allocation10 + $0x1a8] sm:$0xff]
    %v1009 = vld [vmem:[#allocation10 + $0x1b0] sm:$0xff]
    %v1010 = vld [vmem:[#allocation10 + $0x1b8] sm:$0xff]
    %v1011 = vld [vmem:[#allocation10 + $0x1c0] sm:$0xff]
    %v1012 = vld [vmem:[#allocation10 + $0x1c8] sm:$0xff]
    %v1013 = vld [vmem:[#allocation10 + $0x1d0] sm:$0xff]
    %v1014 = vld [vmem:[#allocation10 + $0x1d8] sm:$0xff]
    %v1015 = vld [vmem:[#allocation10 + $0x1e0] sm:$0xff]
    %v1016 = vld [vmem:[#allocation10 + $0x1e8] sm:$0xff]
    %v1017 = vld [vmem:[#allocation10 + $0x1f0] sm:$0xff]
    %v1018 = vld [vmem:[#allocation10 + $0x1f8] sm:$0xff]
    %v1019 = vld [vmem:[%s6] sm:$0x1]
    %v1021 = vlaneseq
    %v1022 = vshrl.u32 %v1021, 7
    %v1023 = vsub.s32 0, %v1022
    %v1024 = vrot.slane %v1019, %v1023
    %1026 = vmatprep.subr.mxu0 0.0
    %1027 = vmatpush1.msra.mxu0 %v970
    %1028 = vmatprep.subr.mxu0 0.0
    %1029 = vmatpush1.msra.mxu0 %v969
    %1030 = vmatprep.subr.mxu0 0.0
    %1031 = vmatpush1.msra.mxu0 %v968
    %1032 = vmatprep.subr.mxu0 0.0
    %1033 = vmatpush1.msra.mxu0 %v967
    %1034 = vmatprep.subr.mxu0 0.0
    %1035 = vmatpush1.msra.mxu0 %v966
    %1036 = vmatprep.subr.mxu0 0.0
    %1037 = vmatpush1.msra.mxu0 %v965
    %1038 = vmatprep.subr.mxu0 0.0
    %1039 = vmatpush1.msra.mxu0 %v964
    %1040 = vmatprep.subr.mxu0 0.0
    %1041 = vmatpush1.msra.mxu0 %v963
    %1042 = vmatprep.subr.mxu0 0.0
    %1043 = vmatpush1.msra.mxu0 %v962
    %1044 = vmatprep.subr.mxu0 0.0
    %1045 = vmatpush1.msra.mxu0 %v961
    %1046 = vmatprep.subr.mxu0 0.0
    %1047 = vmatpush1.msra.mxu0 %v960
    %1048 = vmatprep.subr.mxu0 0.0
    %1049 = vmatpush1.msra.mxu0 %v959
    %1050 = vmatprep.subr.mxu0 0.0
    %1051 = vmatpush1.msra.mxu0 %v958
    %1052 = vmatprep.subr.mxu0 0.0
    %1053 = vmatpush1.msra.mxu0 %v957
    %1054 = vmatprep.subr.mxu0 0.0
    %1055 = vmatpush1.msra.mxu0 %v956
    %1056 = vmatprep.subr.mxu0 0.0
    %1057 = vmatpush1.msra.mxu0 %v955
    %1058 = vmatprep.subr.mxu0 0.0
    %1059 = vmatpush2.msra.mxu0 %v986
    %1060 = vmatprep.subr.mxu0 0.0
    %1061 = vmatpush2.msra.mxu0 %v985
    %1062 = vmatprep.subr.mxu0 0.0
    %1063 = vmatpush2.msra.mxu0 %v984
    %1064 = vmatprep.subr.mxu0 0.0
    %1065 = vmatpush2.msra.mxu0 %v983
    %1066 = vmatprep.subr.mxu0 0.0
    %1067 = vmatpush2.msra.mxu0 %v982
    %1068 = vmatprep.subr.mxu0 0.0
    %1069 = vmatpush2.msra.mxu0 %v981
    %1070 = vmatprep.subr.mxu0 0.0
    %1071 = vmatpush2.msra.mxu0 %v980
    %1072 = vmatprep.subr.mxu0 0.0
    %1073 = vmatpush2.msra.mxu0 %v979
    %1074 = vmatprep.subr.mxu0 0.0
    %1075 = vmatpush2.msra.mxu0 %v978
    %1076 = vmatprep.subr.mxu0 0.0
    %1077 = vmatpush2.msra.mxu0 %v977
    %1078 = vmatprep.subr.mxu0 0.0
    %1079 = vmatpush2.msra.mxu0 %v976
    %1080 = vmatprep.subr.mxu0 0.0
    %1081 = vmatpush2.msra.mxu0 %v975
    %1082 = vmatprep.subr.mxu0 0.0
    %1083 = vmatpush2.msra.mxu0 %v974
    %1084 = vmatprep.subr.mxu0 0.0
    %1085 = vmatpush2.msra.mxu0 %v973
    %1086 = vmatprep.subr.mxu0 0.0
    %1087 = vmatpush2.msra.mxu0 %v972
    %1088 = vmatprep.subr.mxu0 0.0
    %1089 = vmatpush2.msra.mxu0 %v971
    %1090 = vmatprep.mubr.f32.mxu0 %v952
    %1091 = vmatmul.mubr.f32.gmra.mxu0 %v951
    %v1092 = vpop.f32.mrf.mxu0
    %v1093 = vadd.f32 %v1024, %v1092
    %v1094 = vpop.f32.mrf.mxu0
    %1095 = vdwg.mxu0
    %1096 = vmatprep.subr.mxu0 0.0
    %1097 = vmatpush1.msra.mxu0 %v1002
    %1098 = vmatprep.subr.mxu0 0.0
    %1099 = vmatpush1.msra.mxu0 %v1001
    %1100 = vmatprep.subr.mxu0 0.0
    %1101 = vmatpush1.msra.mxu0 %v1000
    %1102 = vmatprep.subr.mxu0 0.0
    %1103 = vmatpush1.msra.mxu0 %v999
    %1104 = vmatprep.subr.mxu0 0.0
    %1105 = vmatpush1.msra.mxu0 %v998
    %1106 = vmatprep.subr.mxu0 0.0
    %1107 = vmatpush1.msra.mxu0 %v997
    %1108 = vmatprep.subr.mxu0 0.0
    %1109 = vmatpush1.msra.mxu0 %v996
    %1110 = vmatprep.subr.mxu0 0.0
    %1111 = vmatpush1.msra.mxu0 %v995
    %1112 = vmatprep.subr.mxu0 0.0
    %1113 = vmatpush1.msra.mxu0 %v994
    %1114 = vmatprep.subr.mxu0 0.0
    %1115 = vmatpush1.msra.mxu0 %v993
    %1116 = vmatprep.subr.mxu0 0.0
    %1117 = vmatpush1.msra.mxu0 %v992
    %1118 = vmatprep.subr.mxu0 0.0
    %1119 = vmatpush1.msra.mxu0 %v991
    %1120 = vmatprep.subr.mxu0 0.0
    %1121 = vmatpush1.msra.mxu0 %v990
    %1122 = vmatprep.subr.mxu0 0.0
    %1123 = vmatpush1.msra.mxu0 %v989
    %1124 = vmatprep.subr.mxu0 0.0
    %1125 = vmatpush1.msra.mxu0 %v988
    %1126 = vmatprep.subr.mxu0 0.0
    %1127 = vmatpush1.msra.mxu0 %v987
    %1128 = vmatprep.subr.mxu0 0.0
    %1129 = vmatpush2.msra.mxu0 %v1018
    %1130 = vmatprep.subr.mxu0 0.0
    %1131 = vmatpush2.msra.mxu0 %v1017
    %1132 = vmatprep.subr.mxu0 0.0
    %1133 = vmatpush2.msra.mxu0 %v1016
    %1134 = vmatprep.subr.mxu0 0.0
    %1135 = vmatpush2.msra.mxu0 %v1015
    %1136 = vmatprep.subr.mxu0 0.0
    %1137 = vmatpush2.msra.mxu0 %v1014
    %1138 = vmatprep.subr.mxu0 0.0
    %1139 = vmatpush2.msra.mxu0 %v1013
    %1140 = vmatprep.subr.mxu0 0.0
    %1141 = vmatpush2.msra.mxu0 %v1012
    %1142 = vmatprep.subr.mxu0 0.0
    %1143 = vmatpush2.msra.mxu0 %v1011
    %1144 = vmatprep.subr.mxu0 0.0
    %1145 = vmatpush2.msra.mxu0 %v1010
    %1146 = vmatprep.subr.mxu0 0.0
    %1147 = vmatpush2.msra.mxu0 %v1009
    %1148 = vmatprep.subr.mxu0 0.0
    %1149 = vmatpush2.msra.mxu0 %v1008
    %1150 = vmatprep.subr.mxu0 0.0
    %1151 = vmatpush2.msra.mxu0 %v1007
    %1152 = vmatprep.subr.mxu0 0.0
    %1153 = vmatpush2.msra.mxu0 %v1006
    %1154 = vmatprep.subr.mxu0 0.0
    %1155 = vmatpush2.msra.mxu0 %v1005
    %1156 = vmatprep.subr.mxu0 0.0
    %1157 = vmatpush2.msra.mxu0 %v1004
    %1158 = vmatprep.subr.mxu0 0.0
    %1159 = vmatpush2.msra.mxu0 %v1003
    %1160 = vmatprep.mubr.f32.mxu0 %v954
    %1161 = vmatmul.mubr.f32.gmra.mxu0 %v953
    %v1162 = vpop.f32.mrf.mxu0
    %v1163 = vadd.f32 %v1093, %v1162
    %v1164 = vpop.f32.mrf.mxu0
    %1165 = vdwg.mxu0
    %1166 = vst [vmem:[#allocation11] sm:$0xff] %v1163
    // Predicated region
    $region50: #{tpu_custom_call.1} parent=1 // pred_check
      _
    $region51: #{tpu_custom_call.1} parent=1 // pred_check_branch
      %1168 = sbr.rel (0) target = $region53
    $region52: #{tpu_custom_call.1} parent=1 // pred_region
      %s1170 = ssub.s32 128, 128
      %1171 = vsyncadd [#allocation4], %s1170
      %s1173 = sshll.u32 [#allocation11], 4
      %s1174 = int_to_ptr.vmem [resolvable:$true] %s1173
      %1176 = dma.vmem_to_hbm [thread:$0]  %s1174, 128, %s7, [#allocation4]
    $region53: #{tpu_custom_call.1} parent=1 // pred_fallthru
      _
    // Predicated region
    $region54: #{tpu_custom_call.1} parent=1 // pred_check
      _
    $region55: #{tpu_custom_call.1} parent=1 // pred_check_branch
      %1178 = sbr.rel (0) target = $region57
    $region56: #{tpu_custom_call.1} parent=1 // pred_region
      %1179 = dma.done [#allocation4], 128
    $region57: #{tpu_custom_call.1} parent=1 // pred_fallthru
      _
    %1180 = vsyncpa [#allocation3], 1
    %1181 = vsyncpa [#allocation6], 1
    %1182 = vsyncpa [#allocation9], 1
    %1183 = vsyncpa [#allocation4], 1

</llo_original>
